<compile_context>
chip_gen: v7x
topology: tpu7x:2x2x1
jax: 0.10.0
libtpu: 0.0.40
codegen_flags: <defaults>
</compile_context>

<pallas_src>
import functools

import jax
import jax.numpy as jnp
from jax.experimental import pallas as pl
from jax.experimental.pallas import tpu as pltpu


def _round_up(x, m):
    return (x + m - 1) // m * m


def _auto_tile_and_vmem_limit():
    """Pick token-tile size and VMEM limit from the local TPU generation."""
    try:
        info = pltpu.get_tpu_info()
        vmem_cap = getattr(info, "vmem_capacity_bytes", 64 * 1024 * 1024)
    except Exception:  # conservative fallback if query is unavailable
        vmem_cap = 64 * 1024 * 1024
    if vmem_cap >= 96 * 1024 * 1024:        # v5e / v6e: 128 MiB VMEM
        return 2048, 100 * 1024 * 1024
    return 1024, 48 * 1024 * 1024           # v7x: 64 MiB VMEM per TensorCore


def bert_self_output_kernel(hs_ref, inp_ref, w_ref, params_ref, out_ref,
                            *, eps, compute_dtype):
    # Dense: (TM, H) @ (H, H) on the MXU; bf16 inputs, f32 accumulation.
    # Cast happens in-kernel so no extra wrapper HBM pass is needed when the
    # caller's activations are not already in compute_dtype.
    h = jnp.dot(hs_ref[...].astype(compute_dtype), w_ref[...],
                preferred_element_type=jnp.float32)

    # TODO(synk): dropout is identity in eval mode; training-mode dropout would
    # need pltpu.prng_seed + pltpu.prng_random_bits masking in the kernel.

    bias = params_ref[0:1, :]      # (1, H) f32
    gamma = params_ref[1:2, :]
    beta = params_ref[2:3, :]

    # Fused bias + residual add in f32 (residual upcast in-register, not in HBM).
    x = h + inp_ref[...].astype(jnp.float32) + bias

    # LayerNorm over the hidden (lane) axis, f32 statistics.
    mean = jnp.mean(x, axis=-1, keepdims=True)
    xc = x - mean
    var = jnp.mean(xc * xc, axis=-1, keepdims=True)
    inv = jax.lax.rsqrt(var + eps)
    out_ref[...] = (xc * inv * gamma + beta).astype(out_ref.dtype)


def bert_self_output(hidden_states, input_tensor, w, b, gamma, beta,
                     *, eps=1e-12, tile_tokens=None, out_dtype=None,
                     compute_dtype=jnp.bfloat16):
    """BertSelfOutput forward.

    hidden_states, input_tensor : [B, S, H]  (any float dtype; bf16 is fastest)
    w : [H_in, H_out]  -- NOTE: transpose of torch nn.Linear.weight ([out, in]).
                          Pass `torch_weight.T` at the integration boundary.
    b, gamma, beta : [H]
    out_dtype : defaults to hidden_states.dtype (keep activations bf16 so the
                output HBM stream stays 2 B/elem).
    """
    B, S, H = hidden_states.shape
    assert input_tensor.shape == (B, S, H)
    assert w.shape == (H, H), "w must be [H_in, H_out] (i.e. torch nn.Linear weight.T)"
    T = B * S
    out_dtype = hidden_states.dtype if out_dtype is None else out_dtype

    # Token tile: multiple of 8 (sublane) unless T itself is tiny. No padding
    # copy: the ragged last block's out-of-bounds rows compute on undefined
    # data (LayerNorm is per-row, so valid rows are unaffected) and their
    # stores are masked off by Pallas.
    auto_tm, vmem_limit = _auto_tile_and_vmem_limit()
    if tile_tokens is None:
        tile_tokens = auto_tm
    if T <= 8:
        TM = T
    else:
        # Cap TM so the grid has >= 2 steps -> both TensorCores get work on v7x.
        TM = max(8, min(_round_up(tile_tokens, 8), _round_up(pl.cdiv(T, 2), 8)))
    grid = (pl.cdiv(T, TM),)

    # [B, S, H] -> [T, H] is a free, contiguous reshape (no HBM pass).
    hs2 = hidden_states.reshape(T, H)
    in2 = input_tensor.reshape(T, H)

    w_c = w.astype(compute_dtype)                              # VMEM-resident
    params = jnp.stack([b, gamma, beta]).astype(jnp.float32)   # (3, H)

    bytes_accessed = int(
        T * H * (hs2.dtype.itemsize + in2.dtype.itemsize
                 + jnp.dtype(out_dtype).itemsize)
        + H * H * w_c.dtype.itemsize + 3 * H * 4)
    cost = pl.CostEstimate(flops=int(2 * T * H * H + 10 * T * H),
                           bytes_accessed=bytes_accessed,
                           transcendentals=int(T))

    out = pl.pallas_call(
        functools.partial(bert_self_output_kernel, eps=eps,
                          compute_dtype=compute_dtype),
        out_shape=jax.ShapeDtypeStruct((T, H), out_dtype),
        grid_spec=pltpu.PrefetchScalarGridSpec(
            num_scalar_prefetch=0,
            grid=grid,
            in_specs=[
                pl.BlockSpec((TM, H), lambda i: (i, 0)),   # hidden_states tile
                pl.BlockSpec((TM, H), lambda i: (i, 0)),   # residual tile
                pl.BlockSpec((H, H), lambda i: (0, 0)),    # dense weight (resident)
                pl.BlockSpec((3, H), lambda i: (0, 0)),    # packed bias/gamma/beta
            ],
            out_specs=pl.BlockSpec((TM, H), lambda i: (i, 0)),
        ),
        compiler_params=pltpu.CompilerParams(
            dimension_semantics=("parallel",),     # token tiles are independent
            vmem_limit_bytes=vmem_limit),
        cost_estimate=cost,
    )(hs2, in2, w_c, params)

    return out.reshape(B, S, H)


def reference(hidden_states, input_tensor, w, b, gamma, beta, *, eps=1e-12,
              compute_dtype=jnp.bfloat16):
    """Pure-JAX reference mimicking the kernel numerics (bf16 matmul, f32 LN)."""
    B, S, H = hidden_states.shape
    hs2 = hidden_states.reshape(B * S, H).astype(compute_dtype)
    h = jnp.dot(hs2, w.astype(compute_dtype), preferred_element_type=jnp.float32)
    x = h + input_tensor.reshape(B * S, H).astype(jnp.float32) + b.astype(jnp.float32)
    mean = jnp.mean(x, axis=-1, keepdims=True)
    var = jnp.mean((x - mean) ** 2, axis=-1, keepdims=True)
    y = (x - mean) * jax.lax.rsqrt(var + eps) * gamma + beta
    return y.astype(hidden_states.dtype).reshape(B, S, H)


if __name__ == "__main__":
    B, S, H = 2, 8, 32  # batch, seq, hidden_size (small demo shapes)
    key = jax.random.PRNGKey(0)
    k1, k2, k3, k4 = jax.random.split(key, 4)

    # Activations in bf16 -- the intended fast path (2 B/elem HBM streams).
    hidden_states = jax.random.normal(k1, (B, S, H), dtype=jnp.float32).astype(jnp.bfloat16)
    input_tensor = jax.random.normal(k2, (B, S, H), dtype=jnp.float32).astype(jnp.bfloat16)

    # torch-style nn.Linear weight is [out, in]; the kernel takes its transpose.
    w_torch = jax.random.normal(k3, (H, H), dtype=jnp.float32) * (1.0 / jnp.sqrt(H))
    w = w_torch.T                                   # [H_in, H_out]
    b = jax.random.normal(k4, (H,), dtype=jnp.float32) * 0.01
    gamma = jnp.ones((H,), dtype=jnp.float32)
    beta = jnp.zeros((H,), dtype=jnp.float32)

    out = bert_self_output(hidden_states, input_tensor, w, b, gamma, beta)
    out = jax.block_until_ready(out)

    ref = reference(hidden_states, input_tensor, w, b, gamma, beta)
    assert out.shape == (B, S, H)
    assert out.dtype == hidden_states.dtype
    err = jnp.max(jnp.abs(out.astype(jnp.float32) - ref.astype(jnp.float32)))
    assert err < 5e-2, f"mismatch vs reference: max |err| = {err}"
    print("KERNEL_OK")
</pallas_src>

<mosaic_0001>
module attributes {stable_mosaic.version = 11 : i64} {
  func.func @bert_self_output_kernel(%arg0: i32, %arg1: memref<8x32xbf16, #tpu.memory_space<vmem>>, %arg2: memref<8x32xbf16, #tpu.memory_space<vmem>>, %arg3: memref<32x32xbf16, #tpu.memory_space<vmem>>, %arg4: memref<3x32xf32, #tpu.memory_space<vmem>>, %arg5: memref<8x32xbf16, #tpu.memory_space<vmem>>) attributes {dimension_semantics = [#tpu.dimension_semantics<parallel>], iteration_bounds = array<i64: 2>, scalar_prefetch = 0 : i64, scratch_operands = 0 : i64, tpu.core_type = #tpu.core_type<tc>, window_params = [{transform_indices = @transform_0, window_bounds = array<i64: 8, 32>}, {transform_indices = @transform_1, window_bounds = array<i64: 8, 32>}, {pipeline_mode = #tpu.pipeline_mode<synchronous>, transform_indices = @transform_2, window_bounds = array<i64: 32, 32>}, {pipeline_mode = #tpu.pipeline_mode<synchronous>, transform_indices = @transform_3, window_bounds = array<i64: 3, 32>}, {transform_indices = @transform_4, window_bounds = array<i64: 8, 32>}]} {
    %c0 = arith.constant 0 : index
    %c0_0 = arith.constant 0 : index
    %0 = vector.load %arg1[%c0, %c0_0] : memref<8x32xbf16, #tpu.memory_space<vmem>>, vector<8x32xbf16>
    %c0_1 = arith.constant 0 : index
    %c0_2 = arith.constant 0 : index
    %1 = vector.load %arg3[%c0_1, %c0_2] : memref<32x32xbf16, #tpu.memory_space<vmem>>, vector<32x32xbf16>
    %cst = arith.constant dense<0.000000e+00> : vector<8x32xf32>
    %2 = tpu.matmul %0, %1, %cst {dimension_numbers = #tpu.dot_dimension_numbers<[1], [0], [0], [1], [0, 0, 1, 1], [], []>} : vector<8x32xbf16>, vector<32x32xbf16>, vector<8x32xf32> -> vector<8x32xf32>
    %c0_3 = arith.constant 0 : index
    %c0_4 = arith.constant 0 : index
    %3 = vector.load %arg4[%c0_3, %c0_4] : memref<3x32xf32, #tpu.memory_space<vmem>>, vector<1x32xf32>
    %c1 = arith.constant 1 : index
    %c0_5 = arith.constant 0 : index
    %4 = vector.load %arg4[%c1, %c0_5] : memref<3x32xf32, #tpu.memory_space<vmem>>, vector<1x32xf32>
    %c2 = arith.constant 2 : index
    %c0_6 = arith.constant 0 : index
    %5 = vector.load %arg4[%c2, %c0_6] : memref<3x32xf32, #tpu.memory_space<vmem>>, vector<1x32xf32>
    %c0_7 = arith.constant 0 : index
    %c0_8 = arith.constant 0 : index
    %6 = vector.load %arg2[%c0_7, %c0_8] : memref<8x32xbf16, #tpu.memory_space<vmem>>, vector<8x32xbf16>
    %7 = arith.extf %6 : vector<8x32xbf16> to vector<8x32xf32>
    %8 = arith.addf %2, %7 : vector<8x32xf32>
    %9 = vector.broadcast %3 : vector<1x32xf32> to vector<8x32xf32>
    %10 = arith.addf %8, %9 : vector<8x32xf32>
    %cst_9 = arith.constant dense<0.000000e+00> : vector<8xf32>
    %11 = vector.multi_reduction <add>, %10, %cst_9 [1] : vector<8x32xf32> to vector<8xf32>
    %12 = vector.shape_cast %11 : vector<8xf32> to vector<8x1xf32>
    %cst_10 = arith.constant 3.200000e+01 : f32
    %13 = vector.broadcast %cst_10 : f32 to vector<8x1xf32>
    %14 = arith.divf %12, %13 : vector<8x1xf32>
    %15 = vector.broadcast %14 : vector<8x1xf32> to vector<8x32xf32>
    %16 = arith.subf %10, %15 : vector<8x32xf32>
    %17 = arith.mulf %16, %16 : vector<8x32xf32>
    %cst_11 = arith.constant dense<0.000000e+00> : vector<8xf32>
    %18 = vector.multi_reduction <add>, %17, %cst_11 [1] : vector<8x32xf32> to vector<8xf32>
    %19 = vector.shape_cast %18 : vector<8xf32> to vector<8x1xf32>
    %cst_12 = arith.constant 3.200000e+01 : f32
    %20 = vector.broadcast %cst_12 : f32 to vector<8x1xf32>
    %21 = arith.divf %19, %20 : vector<8x1xf32>
    %cst_13 = arith.constant 9.99999996E-13 : f32
    %22 = vector.broadcast %cst_13 : f32 to vector<8x1xf32>
    %23 = arith.addf %21, %22 : vector<8x1xf32>
    %24 = math.rsqrt %23 : vector<8x1xf32>
    %25 = vector.broadcast %24 : vector<8x1xf32> to vector<8x32xf32>
    %26 = arith.mulf %16, %25 : vector<8x32xf32>
    %27 = vector.broadcast %4 : vector<1x32xf32> to vector<8x32xf32>
    %28 = arith.mulf %26, %27 : vector<8x32xf32>
    %29 = vector.broadcast %5 : vector<1x32xf32> to vector<8x32xf32>
    %30 = arith.addf %28, %29 : vector<8x32xf32>
    %31 = arith.truncf %30 : vector<8x32xf32> to vector<8x32xbf16>
    %c0_14 = arith.constant 0 : index
    %c0_15 = arith.constant 0 : index
    %32 = vector.load %arg5[%c0_14, %c0_15] : memref<8x32xbf16, #tpu.memory_space<vmem>>, vector<8x32xbf16>
    tpu.vector_store %arg5[%c0_14, %c0_15], %31 {strides = array<i32>} : memref<8x32xbf16, #tpu.memory_space<vmem>>, vector<8x32xbf16>,
    return
  }
  func.func @transform_0(%arg0: i32) -> (i32, i32) {
    %c0_i32 = arith.constant 0 : i32
    %c0_i32_0 = arith.constant 0 : i32
    return %arg0, %c0_i32 : i32, i32
  }
  func.func @transform_1(%arg0: i32) -> (i32, i32) {
    %c0_i32 = arith.constant 0 : i32
    %c0_i32_0 = arith.constant 0 : i32
    return %arg0, %c0_i32 : i32, i32
  }
  func.func @transform_2(%arg0: i32) -> (i32, i32) {
    %c0_i32 = arith.constant 0 : i32
    %c0_i32_0 = arith.constant 0 : i32
    %c0_i32_1 = arith.constant 0 : i32
    return %c0_i32, %c0_i32_0 : i32, i32
  }
  func.func @transform_3(%arg0: i32) -> (i32, i32) {
    %c0_i32 = arith.constant 0 : i32
    %c0_i32_0 = arith.constant 0 : i32
    %c0_i32_1 = arith.constant 0 : i32
    return %c0_i32, %c0_i32_0 : i32, i32
  }
  func.func @transform_4(%arg0: i32) -> (i32, i32) {
    %c0_i32 = arith.constant 0 : i32
    %c0_i32_0 = arith.constant 0 : i32
    return %arg0, %c0_i32 : i32, i32
  }
}

</mosaic_0001>

<llo_original>
// kernel: tpu_custom_call.1
$region0: #{tpu_custom_call.1}
  #allocation0 [shape = 'u32[]', space=smem, size = 0x4, offset = 0x4, fixed_abs, tag = 'smem constant byte address 0x4 - core index']
  #allocation1 [shape = 'u32[144,128]{1,0:T(1,128)}', space=vmem, size = 0x12000, scoped, tag = 'internal scratch']
  %s0 = inlined_call_operand.hbm [shape: bf16[16,32], index: 0, kind: input, shape index: {}]
  %s1 = inlined_call_operand.hbm [shape: bf16[16,32], index: 1, kind: input, shape index: {}]
  %s2 = inlined_call_operand.hbm [shape: bf16[32,32], index: 2, kind: input, shape index: {}]
  %s3 = inlined_call_operand.vmem [shape: f32[3,32], index: 3, kind: input, shape index: {}]
  %s4 = inlined_call_operand.hbm [shape: bf16[16,32], index: 4, kind: output, shape index: {}]
  %s5 = sld [smem:[#allocation0]]
  $region61: #{tpu_custom_call.1} parent=0
    _
  %s7 = ssub.s32 1, %s5
  %s8 = scalar_select 0, %s7, %s5
  $region1: #{tpu_custom_call.1} parent=0
    #allocation2 [shape = 'u8[4096]{0}', space=vmem, size = 0x1000, scoped, tag = 'input window, operand 0']
    #allocation3 [shape = 's32[2]{0}', space=sflag, size = 0x8, scoped, tag = 'scoped memory for tpu_custom_call.1']
    #allocation4 [shape = 's32[2]{0}', space=sflag, size = 0x8, scoped, tag = 'scoped memory for tpu_custom_call.1']
    #allocation5 [shape = 'u8[4096]{0}', space=vmem, size = 0x1000, scoped, tag = 'input window, operand 1']
    #allocation6 [shape = 's32[2]{0}', space=sflag, size = 0x8, scoped, tag = 'scoped memory for tpu_custom_call.1']
    #allocation7 [shape = 'u8[8192]{0}', space=vmem, size = 0x2000, scoped, tag = 'input window, operand 2, single buffered']
    #allocation8 [shape = 'u8[4096]{0}', space=vmem, size = 0x1000, scoped, tag = 'output window, operand 0']
    %9 = vsyncpa [#allocation3], 0
    %s10 = scalar_lea.sflag [#allocation3], 1
    %11 = vsyncpa %s10, 0
    %12 = vsyncpa [#allocation6], 0
    %s13 = scalar_lea.sflag [#allocation6], 1
    %14 = vsyncpa %s13, 0
    %15 = vsyncpa [#allocation4], 0
    %s16 = scalar_lea.sflag [#allocation4], 1
    %17 = vsyncpa %s16, 0
    loop: start=0, step=1, limit=4
    $region2: #{tpu_custom_call.1} parent=1 // loop_pre_header
      _
    $region3: #{tpu_custom_call.1} parent=1 // loop_header
      %s19 = sphi 0, %s23
      %p20 = scmp.ge.s32.totalorder %s19, 4
      %s29 = sphi 0, %s31
      %s32 = sphi 0, %s29
      %s33 = sphi 0, %s32
      %s49 = sphi 0, %s33
      %s55 = sphi 0, %s57
      %s58 = sphi 0, %s55
      %s59 = sphi 0, %s58
      %s75 = sphi 0, %s59
      %s79 = sphi 0, %s79
      %s81 = sphi 0, %s79
      %s82 = sphi 0, %s81
      %s96 = sphi 0, %s82
      %s100 = sphi 0, %s100
      %s102 = sphi 0, %s100
      %s103 = sphi 0, %s102
      %s117 = sphi 0, %s103
      %s123 = sphi 0, %s125
      %s126 = sphi 0, %s123
      %s127 = sphi 0, %s126
      %s143 = sphi 0, %s127
    $region4: #{tpu_custom_call.1} parent=1 // loop_header_branch
      %22 = sbr.rel (%p20) target = $region8
    $region5: #{tpu_custom_call.1} parent=1 // loop_body
      %s24 = ssub.s32 %s19, 1
      %s25 = ssub.s32 %s19, 2
      %s26 = sadd.s32 %s19, 1
      %s27 = ssub.s32 %s19, %s26
      %p28 = scmp.eq.s32.totalorder %s27, 0
      %s30 = sadd.s32 %s29, 1
      %s31 = scalar_select %p28, %s29, %s30
      %p34 = pneg %p28
      %p35 = scmp.eq.s32.totalorder %s19, 1
      %p36 = por %p34, %p35
      %p37 = scmp.ne.s32.totalorder %s29, %s32
      %p38 = scmp.eq.s32.totalorder %s19, 0
      %p39 = por %p37, %p38
      %p40 = scmp.ne.s32.totalorder %s29, %s32
      %p41 = scmp.eq.s32.totalorder %s24, 1
      %p42 = por %p40, %p41
      %p43 = scmp.ne.s32.totalorder %s32, %s33
      %p44 = scmp.eq.s32.totalorder %s24, 0
      %p45 = por %p43, %p44
      %p46 = scmp.ne.s32.totalorder %s32, %s33
      %p47 = scmp.eq.s32.totalorder %s25, 1
      %p48 = por %p46, %p47
      %p50 = scmp.ne.s32.totalorder %s33, %s49
      %p51 = scmp.eq.s32.totalorder %s25, 0
      %p52 = por %p50, %p51
      %s53 = ssub.s32 %s19, %s26
      %p54 = scmp.eq.s32.totalorder %s53, 0
      %s56 = sadd.s32 %s55, 1
      %s57 = scalar_select %p54, %s55, %s56
      %p60 = pneg %p54
      %p61 = scmp.eq.s32.totalorder %s19, 1
      %p62 = por %p60, %p61
      %p63 = scmp.ne.s32.totalorder %s55, %s58
      %p64 = scmp.eq.s32.totalorder %s19, 0
      %p65 = por %p63, %p64
      %p66 = scmp.ne.s32.totalorder %s55, %s58
      %p67 = scmp.eq.s32.totalorder %s24, 1
      %p68 = por %p66, %p67
      %p69 = scmp.ne.s32.totalorder %s58, %s59
      %p70 = scmp.eq.s32.totalorder %s24, 0
      %p71 = por %p69, %p70
      %p72 = scmp.ne.s32.totalorder %s58, %s59
      %p73 = scmp.eq.s32.totalorder %s25, 1
      %p74 = por %p72, %p73
      %p76 = scmp.ne.s32.totalorder %s59, %s75
      %p77 = scmp.eq.s32.totalorder %s25, 0
      %p78 = por %p76, %p77
      %s80 = sadd.s32 %s79, 1
      %p83 = scmp.eq.s32.totalorder %s19, 1
      %p84 = scmp.ne.s32.totalorder %s79, %s81
      %p85 = scmp.eq.s32.totalorder %s19, 0
      %p86 = por %p84, %p85
      %p87 = scmp.ne.s32.totalorder %s79, %s81
      %p88 = scmp.eq.s32.totalorder %s24, 1
      %p89 = por %p87, %p88
      %p90 = scmp.ne.s32.totalorder %s81, %s82
      %p91 = scmp.eq.s32.totalorder %s24, 0
      %p92 = por %p90, %p91
      %p93 = scmp.ne.s32.totalorder %s81, %s82
      %p94 = scmp.eq.s32.totalorder %s25, 1
      %p95 = por %p93, %p94
      %p97 = scmp.ne.s32.totalorder %s82, %s96
      %p98 = scmp.eq.s32.totalorder %s25, 0
      %p99 = por %p97, %p98
      %s101 = sadd.s32 %s100, 1
      %p104 = scmp.eq.s32.totalorder %s19, 1
      %p105 = scmp.ne.s32.totalorder %s100, %s102
      %p106 = scmp.eq.s32.totalorder %s19, 0
      %p107 = por %p105, %p106
      %p108 = scmp.ne.s32.totalorder %s100, %s102
      %p109 = scmp.eq.s32.totalorder %s24, 1
      %p110 = por %p108, %p109
      %p111 = scmp.ne.s32.totalorder %s102, %s103
      %p112 = scmp.eq.s32.totalorder %s24, 0
      %p113 = por %p111, %p112
      %p114 = scmp.ne.s32.totalorder %s102, %s103
      %p115 = scmp.eq.s32.totalorder %s25, 1
      %p116 = por %p114, %p115
      %p118 = scmp.ne.s32.totalorder %s103, %s117
      %p119 = scmp.eq.s32.totalorder %s25, 0
      %p120 = por %p118, %p119
      %s121 = ssub.s32 %s19, %s26
      %p122 = scmp.eq.s32.totalorder %s121, 0
      %s124 = sadd.s32 %s123, 1
      %s125 = scalar_select %p122, %s123, %s124
      %p128 = pneg %p122
      %p129 = scmp.eq.s32.totalorder %s19, 1
      %p130 = por %p128, %p129
      %p131 = scmp.ne.s32.totalorder %s123, %s126
      %p132 = scmp.eq.s32.totalorder %s19, 0
      %p133 = por %p131, %p132
      %p134 = scmp.ne.s32.totalorder %s123, %s126
      %p135 = scmp.eq.s32.totalorder %s24, 1
      %p136 = por %p134, %p135
      %p137 = scmp.ne.s32.totalorder %s126, %s127
      %p138 = scmp.eq.s32.totalorder %s24, 0
      %p139 = por %p137, %p138
      %p140 = scmp.ne.s32.totalorder %s126, %s127
      %p141 = scmp.eq.s32.totalorder %s25, 1
      %p142 = por %p140, %p141
      %p144 = scmp.ne.s32.totalorder %s127, %s143
      %p145 = scmp.eq.s32.totalorder %s25, 0
      %p146 = por %p144, %p145
      %p147 = scmp.le.s32.totalorder 1, %s19
      %p148 = scmp.lt.s32.totalorder %s19, 3
      %p149 = pnand %p147, %p148
      %p150 = pneg %p149
      // Predicated region
      $region9: #{tpu_custom_call.1} parent=5 // pred_check
        _
      $region10: #{tpu_custom_call.1} parent=5 // pred_check_branch
        %152 = sbr.rel (%p149) target = $region12
      $region11: #{tpu_custom_call.1} parent=5 // pred_region
        %s153 = ssub.s32 %s19, 1
        // Predicated region
        $region13: #{tpu_custom_call.1} parent=11 // pred_check
          %p154 = pneg %p92
        $region14: #{tpu_custom_call.1} parent=11 // pred_check_branch
          %156 = sbr.rel (%p154) target = $region16
        $region15: #{tpu_custom_call.1} parent=11 // pred_region
          %s158 = ssub.s32 256, 256
          %159 = vsyncadd [#allocation6], %s158
          %s160 = sshll.u32 [#allocation7], 4
          %s161 = int_to_ptr.vmem [resolvable:$true] %s160
          %166 = dma.hbm_to_vmem [thread:$0]  %s2, 256, %s161, [#allocation6], 64, 64, 4
        $region16: #{tpu_custom_call.1} parent=11 // pred_fallthru
          _
        // Predicated region
        $region17: #{tpu_custom_call.1} parent=11 // pred_check
          %p167 = pneg %p113
        $region18: #{tpu_custom_call.1} parent=11 // pred_check_branch
          %169 = sbr.rel (%p167) target = $region20
        $region19: #{tpu_custom_call.1} parent=11 // pred_region
          _
        $region20: #{tpu_custom_call.1} parent=11 // pred_fallthru
          _
      $region12: #{tpu_custom_call.1} parent=5 // pred_fallthru
        _
      %p170 = scmp.lt.s32.totalorder %s19, 2
      // Predicated region
      $region21: #{tpu_custom_call.1} parent=5 // pred_check
        %p171 = pneg %p170
      $region22: #{tpu_custom_call.1} parent=5 // pred_check_branch
        %173 = sbr.rel (%p171) target = $region24
      $region23: #{tpu_custom_call.1} parent=5 // pred_region
        // Predicated region
        $region25: #{tpu_custom_call.1} parent=23 // pred_check
          %p174 = pneg %p39
        $region26: #{tpu_custom_call.1} parent=23 // pred_check_branch
          %176 = sbr.rel (%p174) target = $region28
        $region27: #{tpu_custom_call.1} parent=23 // pred_region
          %s177 = sand.u32 %s29, 1
          %s178 = scalar_lea.sflag [#allocation3], %s177
          %s179 = sand.u32 %s29, 1
          %s180 = smul.addr %s179, 4
          %s181 = scalar_lea.vmem [#allocation2], %s180
          %s183 = ssub.s32 64, 64
          %184 = vsyncadd %s178, %s183
          %s185 = smul.addr %s19, 64
          %s186 = scalar_lea.hbm %s0, %s185
          %s188 = sshll.u32 %s181, 4
          %s189 = int_to_ptr.vmem [resolvable:$true] %s188
          %191 = dma.hbm_to_vmem [thread:$0]  %s186, 64, %s189, %s178
        $region28: #{tpu_custom_call.1} parent=23 // pred_fallthru
          _
        // Predicated region
        $region29: #{tpu_custom_call.1} parent=23 // pred_check
          %p192 = pneg %p65
        $region30: #{tpu_custom_call.1} parent=23 // pred_check_branch
          %194 = sbr.rel (%p192) target = $region32
        $region31: #{tpu_custom_call.1} parent=23 // pred_region
          %s195 = sand.u32 %s19, 1
          %s196 = scalar_lea.sflag [#allocation6], %s195
          %s197 = sand.u32 %s55, 1
          %s198 = smul.addr %s197, 4
          %s199 = scalar_lea.vmem [#allocation5], %s198
          %s201 = ssub.s32 64, 64
          %202 = vsyncadd %s196, %s201
          %s203 = smul.addr %s19, 64
          %s204 = scalar_lea.hbm %s1, %s203
          %s206 = sshll.u32 %s199, 4
          %s207 = int_to_ptr.vmem [resolvable:$true] %s206
          %209 = dma.hbm_to_vmem [thread:$0]  %s204, 64, %s207, %s196
        $region32: #{tpu_custom_call.1} parent=23 // pred_fallthru
          _
      $region24: #{tpu_custom_call.1} parent=5 // pred_fallthru
        _
      %p210 = scmp.le.s32.totalorder 1, %s19
      %p211 = scmp.lt.s32.totalorder %s19, 3
      %p212 = pnand %p210, %p211
      %p213 = pneg %p212
      // Predicated region
      $region33: #{tpu_custom_call.1} parent=5 // pred_check
        _
      $region34: #{tpu_custom_call.1} parent=5 // pred_check_branch
        %215 = sbr.rel (%p212) target = $region36
      $region35: #{tpu_custom_call.1} parent=5 // pred_region
        %s216 = ssub.s32 %s19, 1
        %s217 = sand.u32 %s32, 1
        %s218 = scalar_lea.sflag [#allocation3], %s217
        %s219 = sand.u32 %s32, 1
        %s220 = smul.addr %s219, 4
        %s221 = scalar_lea.vmem [#allocation2], %s220
        // Predicated region
        $region37: #{tpu_custom_call.1} parent=35 // pred_check
          %p222 = pneg %p45
        $region38: #{tpu_custom_call.1} parent=35 // pred_check_branch
          %224 = sbr.rel (%p222) target = $region40
        $region39: #{tpu_custom_call.1} parent=35 // pred_region
          %225 = dma.done %s218, 64
        $region40: #{tpu_custom_call.1} parent=35 // pred_fallthru
          _
        %s226 = sand.u32 %s24, 1
        %s227 = scalar_lea.sflag [#allocation6], %s226
        %s228 = sand.u32 %s58, 1
        %s229 = smul.addr %s228, 4
        %s230 = scalar_lea.vmem [#allocation5], %s229
        // Predicated region
        $region41: #{tpu_custom_call.1} parent=35 // pred_check
          %p231 = pneg %p71
        $region42: #{tpu_custom_call.1} parent=35 // pred_check_branch
          %233 = sbr.rel (%p231) target = $region44
        $region43: #{tpu_custom_call.1} parent=35 // pred_region
          %234 = dma.done %s227, 64
        $region44: #{tpu_custom_call.1} parent=35 // pred_fallthru
          _
        // Predicated region
        $region45: #{tpu_custom_call.1} parent=35 // pred_check
          %p235 = pneg %p92
        $region46: #{tpu_custom_call.1} parent=35 // pred_check_branch
          %237 = sbr.rel (%p235) target = $region48
        $region47: #{tpu_custom_call.1} parent=35 // pred_region
          %238 = dma.done [#allocation6], 256
        $region48: #{tpu_custom_call.1} parent=35 // pred_fallthru
          _
        %s239 = sand.u32 %s32, 1
        %s240 = scalar_lea.sflag [#allocation3], %s239
        %s241 = sand.u32 %s32, 1
        %s242 = smul.addr %s241, 4
        %s243 = scalar_lea.vmem [#allocation2], %s242
        %p244 = pneg %p45
        %p245 = pneg %p42
        %s246 = sand.u32 %s24, 1
        %s247 = scalar_lea.sflag [#allocation6], %s246
        %s248 = sand.u32 %s58, 1
        %s249 = smul.addr %s248, 4
        %s250 = scalar_lea.vmem [#allocation5], %s249
        %p251 = pneg %p71
        %p252 = pneg %p68
        %p253 = pneg %p92
        %p254 = pneg %p89
        %p255 = pneg %p113
        %p256 = pneg %p110
        %p257 = pneg %p139
        %p258 = pneg %p136
        %s259 = sand.u32 %s126, 1
        %s260 = scalar_lea.sflag [#allocation4], %s259
        %s261 = sand.u32 %s126, 1
        %s262 = smul.addr %s261, 4
        %s263 = scalar_lea.vmem [#allocation8], %s262
        %v265 = vld [vmem:[%s221] sm:$0xf]
        %v266 = vld [vmem:[#allocation7] sm:$0xf]
        %v267 = vld [vmem:[#allocation7 + $0x4] sm:$0xf]
        %v268 = vld [vmem:[#allocation7 + $0x8] sm:$0xf]
        %v269 = vld [vmem:[#allocation7 + $0xc] sm:$0xf]
        %v270 = vld [vmem:[%s3] sm:$0x1]
        %v271 = vld [vmem:[%s3 + $0x1] sm:$0x1]
        %v272 = vld [vmem:[%s3 + $0x2] sm:$0x1]
        %v273 = vld [vmem:[%s230] sm:$0xf]
        %v274 = vunpack.c.l.bf16 %v273
        %v279 = vunpack.c.l.b16 %v266
        %v280 = vunpack.c.l.b16 %v267
        %v281 = vunpack.c.l.b16 %v268
        %v282 = vunpack.c.l.b16 %v269
        %v283 = vpack.c.b16 %v280, %v279
        %v284 = vpack.c.b16 %v282, %v281
        %vm287 = vcmask 261120
        %v289 = vsel %vm287, %v265, 0
        %291 = vmatprep.subr.bf16.mxu0 0
        %292 = vmatpush1.bf16.msra.mxu0 %v283
        %293 = vmatprep.subr.bf16.mxu0 0
        %294 = vmatpush1.bf16.msra.mxu0 %v284
        %295 = vmatprep.subr.bf16.mxu0 0
        %296 = vmatpush1.bf16.msra.mxu0 0
        %297 = vmatprep.subr.bf16.mxu0 0
        %298 = vmatpush1.bf16.msra.mxu0 0
        %299 = vmatprep.subr.bf16.mxu0 0
        %300 = vmatpush1.bf16.msra.mxu0 0
        %301 = vmatprep.subr.bf16.mxu0 0
        %302 = vmatpush1.bf16.msra.mxu0 0
        %303 = vmatprep.subr.bf16.mxu0 0
        %304 = vmatpush1.bf16.msra.mxu0 0
        %305 = vmatprep.subr.bf16.mxu0 0
        %306 = vmatpush1.bf16.msra.mxu0 0
        %307 = vmatprep.subr.bf16.mxu0 0
        %308 = vmatpush1.bf16.msra.mxu0 0
        %309 = vmatprep.subr.bf16.mxu0 0
        %310 = vmatpush1.bf16.msra.mxu0 0
        %311 = vmatprep.subr.bf16.mxu0 0
        %312 = vmatpush1.bf16.msra.mxu0 0
        %313 = vmatprep.subr.bf16.mxu0 0
        %314 = vmatpush1.bf16.msra.mxu0 0
        %315 = vmatprep.subr.bf16.mxu0 0
        %316 = vmatpush1.bf16.msra.mxu0 0
        %317 = vmatprep.subr.bf16.mxu0 0
        %318 = vmatpush1.bf16.msra.mxu0 0
        %319 = vmatprep.subr.bf16.mxu0 0
        %320 = vmatpush1.bf16.msra.mxu0 0
        %321 = vmatprep.subr.bf16.mxu0 0
        %322 = vmatpush1.bf16.msra.mxu0 0
        %323 = vmatprep.mubr.bf16.mxu0 0
        %324 = vmatmul.mubr.bf16.gmra.mrb[0].mxu0 %v289
        %v325 = vpop.f32.mrb[0].mxu0
        %v326 = vadd.f32 %v274, %v325
        %v327 = vpop.f32.mrb[0].mxu0
        %v328 = vpop.f32.mrb[0].mxu0
        %v329 = vpop.f32.mrb[0].mxu0
        %330 = vdwg.mxu0
        %v331 = vlaneseq
        %v332 = vshrl.u32 %v331, 7
        %v333 = vsub.s32 0, %v332
        %v334 = vrot.slane %v270, %v333
        %v335 = vadd.f32 %v326, %v334
        %v336 = vsel %vm287, %v335, 0.0
        %337 = vadd.xlane.f32.xlu0 %v336
        %v338 = vpop.xlane.xlu0 %337
        %v339 = vrcp.pop 32.0
        %v340 = vmul.f32 %v338, %v339
        %v341 = vsub.f32 %v335, %v340
        %v342 = vmul.f32 %v341, %v341
        %v343 = vsel %vm287, %v342, 0.0
        %344 = vadd.xlane.f32.xlu0 %v343
        %v345 = vpop.xlane.xlu0 %344
        %v346 = vmul.f32 %v345, %v339
        %v347 = vadd.f32 %v346, 1e-12
        %v348 = vrsqrt.pop %v347
        %v349 = vmul.f32 %v341, %v348
        %v350 = vlaneseq
        %v351 = vshrl.u32 %v350, 7
        %v352 = vsub.s32 0, %v351
        %v353 = vrot.slane %v271, %v352
        %v354 = vmul.f32 %v349, %v353
        %v355 = vlaneseq
        %v356 = vshrl.u32 %v355, 7
        %v357 = vsub.s32 0, %v356
        %v358 = vrot.slane %v272, %v357
        %v359 = vadd.f32 %v354, %v358
        %v360 = vpack.c.bf16 %v359, %v359
        %vm361 = vcmask 257024
        %362 = vst.msk [vmem:[%s263] sm:$0xf] %vm361, %v360
        %s363 = sand.u32 %s126, 1
        %s364 = scalar_lea.sflag [#allocation4], %s363
        %s365 = sand.u32 %s126, 1
        %s366 = smul.addr %s365, 4
        %s367 = scalar_lea.vmem [#allocation8], %s366
        // Predicated region
        $region49: #{tpu_custom_call.1} parent=35 // pred_check
          %p368 = pneg %p136
        $region50: #{tpu_custom_call.1} parent=35 // pred_check_branch
          %370 = sbr.rel (%p368) target = $region52
        $region51: #{tpu_custom_call.1} parent=35 // pred_region
          %s372 = ssub.s32 64, 64
          %373 = vsyncadd %s364, %s372
          %s374 = smul.addr %s24, 64
          %s375 = scalar_lea.hbm %s4, %s374
          %s377 = sshll.u32 %s367, 4
          %s378 = int_to_ptr.vmem [resolvable:$true] %s377
          %380 = dma.vmem_to_hbm [thread:$0]  %s378, 64, %s375, %s364
        $region52: #{tpu_custom_call.1} parent=35 // pred_fallthru
          _
      $region36: #{tpu_custom_call.1} parent=5 // pred_fallthru
        _
      %p381 = scmp.le.s32.totalorder 2, %s19
      // Predicated region
      $region53: #{tpu_custom_call.1} parent=5 // pred_check
        %p382 = pneg %p381
      $region54: #{tpu_custom_call.1} parent=5 // pred_check_branch
        %384 = sbr.rel (%p382) target = $region56
      $region55: #{tpu_custom_call.1} parent=5 // pred_region
        %s385 = ssub.s32 %s19, 2
        // Predicated region
        $region57: #{tpu_custom_call.1} parent=55 // pred_check
          %p386 = pneg %p142
        $region58: #{tpu_custom_call.1} parent=55 // pred_check_branch
          %388 = sbr.rel (%p386) target = $region60
        $region59: #{tpu_custom_call.1} parent=55 // pred_region
          %s389 = sand.u32 %s127, 1
          %s390 = scalar_lea.sflag [#allocation4], %s389
          %s391 = sand.u32 %s127, 1
          %s392 = smul.addr %s391, 4
          %s393 = scalar_lea.vmem [#allocation8], %s392
          %394 = dma.done %s390, 64
        $region60: #{tpu_custom_call.1} parent=55 // pred_fallthru
          _
      $region56: #{tpu_custom_call.1} parent=5 // pred_fallthru
        _
    $region6: #{tpu_custom_call.1} parent=1 // loop_footer
      %s23 = sadd.s32 1, %s19
    $region7: #{tpu_custom_call.1} parent=1 // loop_footer_branch
      %18 = sbr.rel target = $region3
    $region8: #{tpu_custom_call.1} parent=1 // loop_exit
      _
    %395 = vsyncpa [#allocation3], 1
    %s396 = scalar_lea.sflag [#allocation3], 1
    %397 = vsyncpa %s396, 1
    %398 = vsyncpa [#allocation6], 1
    %s399 = scalar_lea.sflag [#allocation6], 1
    %400 = vsyncpa %s399, 1
    %401 = vsyncpa [#allocation4], 1
    %s402 = scalar_lea.sflag [#allocation4], 1
    %403 = vsyncpa %s402, 1

</llo_original>
